<compile_context>
chip_gen: v7x
topology: tpu7x:2x2x1
jax: 0.10.0
libtpu: 0.0.40
codegen_flags: <defaults>
</compile_context>

<pallas_src>
import jax
import jax.numpy as jnp
import numpy as np
from jax.experimental import pallas as pl
from jax.experimental.pallas import tpu as pltpu


def _round_up(x, m):
    return ((x + m - 1) // m) * m


def _pick_batch_tile(B, N, in_c, hid_p, out_p, vmem_budget=24 * 1024 * 1024):
    """Batch tile targeting ~1024 rows/step, VMEM-capped, >=2 steps if B>=2."""
    # rough per-batch VMEM bytes: double-buffered x/out blocks + f32 temps
    per_b = (N * in_c * 2 * 2            # x block (bf16, 2 buffers)
             + N * out_p * 4 * 2         # out block (f32, 2 buffers)
             + N * (in_c + 2 * hid_p + 2 * out_p) * 4)   # f32 intermediates
    fixed = 2 * (N * N * 2 + in_c * hid_p * 2 + N * hid_p * 4
                 + hid_p * out_p * 2 + out_p * 4)
    tb_vmem = max(1, (vmem_budget - fixed) // max(per_b, 1))
    tb = max(1, 1024 // max(N, 1))       # ~1024 matmul rows per grid step
    tb = min(tb, int(tb_vmem), B)
    if B >= 2:
        tb = min(tb, pl.cdiv(B, 2))      # keep at least 2 steps (v7x megacore)
    return max(int(tb), 1)


def gcn_kernel(a_ref, x_ref, w1_ref, b1a_ref, w2_ref, b2_ref, o_ref):
    TB, N, in_c = x_ref.shape
    hid_p = w1_ref.shape[1]
    out_p = w2_ref.shape[1]

    a = a_ref[...]                                   # [N, N] bf16 (shared)
    a_b = jnp.broadcast_to(a, (TB, N, N))            # batched view of A_norm

    # ---- layer 1 (aggregate-first): relu((A @ x) @ W1 + rowsum(A)*b1) ----
    ax = jnp.einsum('bij,bjk->bik', a_b, x_ref[...],
                    preferred_element_type=jnp.float32)          # [TB, N, in_c] f32
    h1 = jnp.dot(ax.reshape(TB * N, in_c).astype(jnp.bfloat16), w1_ref[...],
                 preferred_element_type=jnp.float32)             # [TB*N, hid_p] f32
    h1 = h1.reshape(TB, N, hid_p) + b1a_ref[...][None]
    h1 = jnp.maximum(h1, 0.0)

    # ---- layer 2 (project-first): relu(A @ (h1 @ W2 + b2)) ----
    h2 = jnp.dot(h1.reshape(TB * N, hid_p).astype(jnp.bfloat16), w2_ref[...],
                 preferred_element_type=jnp.float32) + b2_ref[...]   # [TB*N, out_p]
    h2 = jnp.einsum('bij,bjk->bik', a_b,
                    h2.reshape(TB, N, out_p).astype(jnp.bfloat16),
                    preferred_element_type=jnp.float32)          # [TB, N, out_p]
    o_ref[...] = jnp.maximum(h2, 0.0).astype(o_ref.dtype)


def gcn_forward(graph, flow_x, w1, b1, w2, b2):
    """graph: [1, N, N]; flow_x: [B, N, H, D]; returns [B, N, 1, out_c]."""
    B, N = flow_x.shape[0], flow_x.shape[1]
    in_c = int(np.prod(flow_x.shape[2:]))
    x = flow_x.reshape(B, N, in_c).astype(jnp.float32)

    # --- process_graph (cheap preprocessing, plain JAX) ---
    A = graph[0].astype(jnp.float32) + jnp.eye(N, dtype=jnp.float32)
    deg = jnp.sum(A, axis=1)
    inv_deg = jnp.where(deg == 0.0, 0.0, 1.0 / deg)
    a_norm = inv_deg[:, None] * A                     # diag(deg^-1) @ A

    hid_c, out_c = int(w1.shape[1]), int(w2.shape[1])
    hid_p, out_p = _round_up(hid_c, 128), _round_up(out_c, 128)

    # aggregate-first bias for layer 1 (exact): A@(xW1+b1) == (A@x)W1 + rowsum(A)*b1
    row_sum = jnp.sum(a_norm, axis=1, keepdims=True)                  # [N, 1] f32
    b1_agg = row_sum * b1.astype(jnp.float32)[None, :]                # [N, hid_c]
    b1_agg = jnp.pad(b1_agg, ((0, 0), (0, hid_p - hid_c)))
    b2_p = jnp.pad(b2.astype(jnp.float32)[None, :], ((0, 0), (0, out_p - out_c)))
    w1_p = jnp.pad(w1.astype(jnp.bfloat16), ((0, 0), (0, hid_p - hid_c)))
    w2_p = jnp.pad(w2.astype(jnp.bfloat16),
                   ((0, hid_p - hid_c), (0, out_p - out_c)))

    a_bf = a_norm.astype(jnp.bfloat16)
    x_bf = x.astype(jnp.bfloat16)

    TB = _pick_batch_tile(B, N, in_c, hid_p, out_p)
    B_pad = pl.cdiv(B, TB) * TB
    if B_pad != B:
        x_bf = jnp.pad(x_bf, ((0, B_pad - B), (0, 0), (0, 0)))

    out = pl.pallas_call(
        gcn_kernel,
        out_shape=jax.ShapeDtypeStruct((B_pad, N, out_p), jnp.float32),
        grid_spec=pltpu.PrefetchScalarGridSpec(
            num_scalar_prefetch=0,
            grid=(B_pad // TB,),
            in_specs=[
                pl.BlockSpec((N, N), lambda t: (0, 0)),           # A_norm (bf16)
                pl.BlockSpec((TB, N, in_c), lambda t: (t, 0, 0)), # x batch tile
                pl.BlockSpec((in_c, hid_p), lambda t: (0, 0)),    # W1 (padded)
                pl.BlockSpec((N, hid_p), lambda t: (0, 0)),       # rowsum(A)*b1
                pl.BlockSpec((hid_p, out_p), lambda t: (0, 0)),   # W2 (padded)
                pl.BlockSpec((1, out_p), lambda t: (0, 0)),       # b2 (padded)
            ],
            out_specs=pl.BlockSpec((TB, N, out_p), lambda t: (t, 0, 0)),
        ),
        compiler_params=pltpu.CompilerParams(
            dimension_semantics=("parallel",),
            vmem_limit_bytes=48 * 1024 * 1024),
    )(a_bf, x_bf, w1_p, b1_agg, w2_p, b2_p)

    # drop batch padding, lane padding; unsqueeze(2)
    return out[:B, :, None, :out_c]


# ----------------------------- references -----------------------------------

def _reference_f32(a_norm, x, w1, b1, w2, b2):
    h1 = jnp.maximum(jnp.einsum('ij,bjk->bik', a_norm, x @ w1 + b1), 0.0)
    h2 = jnp.maximum(jnp.einsum('ij,bjk->bik', a_norm, h1 @ w2 + b2), 0.0)
    return h2[:, :, None, :]


def _reference_bf16(a_norm, x, w1, b1, w2, b2):
    """Mirrors the kernel's exact precision policy (bf16 inputs, f32 accum)."""
    f32, bf = jnp.float32, jnp.bfloat16
    a_bf, x_bf = a_norm.astype(bf), x.astype(bf)
    w1_bf, w2_bf = w1.astype(bf), w2.astype(bf)
    row_sum = jnp.sum(a_norm, axis=1, keepdims=True)
    b1_agg = row_sum * b1.astype(f32)[None, :]
    ax = jnp.einsum('ij,bjk->bik', a_bf, x_bf, preferred_element_type=f32)
    h1 = jnp.einsum('bnk,kh->bnh', ax.astype(bf), w1_bf,
                    preferred_element_type=f32) + b1_agg[None]
    h1 = jnp.maximum(h1, 0.0)
    h2 = jnp.einsum('bnh,ho->bno', h1.astype(bf), w2_bf,
                    preferred_element_type=f32) + b2.astype(f32)
    h2 = jnp.einsum('ij,bjk->bik', a_bf, h2.astype(bf), preferred_element_type=f32)
    return jnp.maximum(h2, 0.0)[:, :, None, :]


if __name__ == "__main__":
    key = jax.random.PRNGKey(0)
    k_g, k_x, k_w1, k_b1, k_w2, k_b2 = jax.random.split(key, 6)

    # small shapes: B=2 batches, N=16 graph nodes, flow_x [B, N, 2, 4] -> in_c=8
    B, N, H, D = 2, 16, 2, 4
    in_c, hid_c, out_c = H * D, 32, 16

    graph = (jax.random.uniform(k_g, (1, N, N)) > 0.7).astype(jnp.float32)
    flow_x = jax.random.normal(k_x, (B, N, H, D), dtype=jnp.float32)

    bound1 = 1.0 / np.sqrt(in_c)
    bound2 = 1.0 / np.sqrt(hid_c)
    w1 = jax.random.uniform(k_w1, (in_c, hid_c), minval=-bound1, maxval=bound1)
    b1 = jax.random.uniform(k_b1, (hid_c,), minval=-bound1, maxval=bound1)
    w2 = jax.random.uniform(k_w2, (hid_c, out_c), minval=-bound2, maxval=bound2)
    b2 = jax.random.uniform(k_b2, (out_c,), minval=-bound2, maxval=bound2)

    out = jax.block_until_ready(gcn_forward(graph, flow_x, w1, b1, w2, b2))
    assert out.shape == (B, N, 1, out_c), out.shape

    # rebuild a_norm / x for the references
    x = flow_x.reshape(B, N, in_c).astype(jnp.float32)
    A = graph[0].astype(jnp.float32) + jnp.eye(N, dtype=jnp.float32)
    deg = jnp.sum(A, axis=1)
    inv_deg = jnp.where(deg == 0.0, 0.0, 1.0 / deg)
    a_norm = inv_deg[:, None] * A

    # tight check vs. a reference using the identical bf16/f32 precision policy
    ref_bf = jax.block_until_ready(_reference_bf16(a_norm, x, w1, b1, w2, b2))
    np.testing.assert_allclose(np.asarray(out), np.asarray(ref_bf),
                               rtol=2e-3, atol=2e-3)
    # loose check vs. the pure-f32 original-order reference (bf16 rounding only)
    ref_f32 = jax.block_until_ready(_reference_f32(a_norm, x, w1, b1, w2, b2))
    np.testing.assert_allclose(np.asarray(out), np.asarray(ref_f32),
                               rtol=5e-2, atol=5e-2)

    print("KERNEL_OK")
</pallas_src>

<mosaic_0001>
module attributes {stable_mosaic.version = 11 : i64} {
  func.func @gcn_kernel(%arg0: i32, %arg1: memref<16x16xbf16, #tpu.memory_space<vmem>>, %arg2: memref<1x16x8xbf16, #tpu.memory_space<vmem>>, %arg3: memref<8x128xbf16, #tpu.memory_space<vmem>>, %arg4: memref<16x128xf32, #tpu.memory_space<vmem>>, %arg5: memref<128x128xbf16, #tpu.memory_space<vmem>>, %arg6: memref<1x128xf32, #tpu.memory_space<vmem>>, %arg7: memref<1x16x128xf32, #tpu.memory_space<vmem>>) attributes {dimension_semantics = [#tpu.dimension_semantics<parallel>], iteration_bounds = array<i64: 2>, scalar_prefetch = 0 : i64, scratch_operands = 0 : i64, tpu.core_type = #tpu.core_type<tc>, window_params = [{pipeline_mode = #tpu.pipeline_mode<synchronous>, transform_indices = @transform_0, window_bounds = array<i64: 16, 16>}, {transform_indices = @transform_1, window_bounds = array<i64: 1, 16, 8>}, {pipeline_mode = #tpu.pipeline_mode<synchronous>, transform_indices = @transform_2, window_bounds = array<i64: 8, 128>}, {pipeline_mode = #tpu.pipeline_mode<synchronous>, transform_indices = @transform_3, window_bounds = array<i64: 16, 128>}, {pipeline_mode = #tpu.pipeline_mode<synchronous>, transform_indices = @transform_4, window_bounds = array<i64: 128, 128>}, {pipeline_mode = #tpu.pipeline_mode<synchronous>, transform_indices = @transform_5, window_bounds = array<i64: 1, 128>}, {transform_indices = @transform_6, window_bounds = array<i64: 1, 16, 128>}]} {
    %c0 = arith.constant 0 : index
    %c0_0 = arith.constant 0 : index
    %0 = vector.load %arg1[%c0, %c0_0] : memref<16x16xbf16, #tpu.memory_space<vmem>>, vector<16x16xbf16>
    %1 = vector.shape_cast %0 : vector<16x16xbf16> to vector<1x16x16xbf16>
    %c0_1 = arith.constant 0 : index
    %c0_2 = arith.constant 0 : index
    %c0_3 = arith.constant 0 : index
    %2 = vector.load %arg2[%c0_1, %c0_2, %c0_3] : memref<1x16x8xbf16, #tpu.memory_space<vmem>>, vector<1x16x8xbf16>
    "tpu.trace_start"() <{level = 10 : i32, message = "bij,bjk->bik"}> : () -> ()
    %cst = arith.constant dense<0.000000e+00> : vector<1x16x8xf32>
    %3 = tpu.matmul %1, %2, %cst {dimension_numbers = #tpu.dot_dimension_numbers<[2], [1], [1], [2], [0, 0, 0, 1, 1, 2], [0], [0]>} : vector<1x16x16xbf16>, vector<1x16x8xbf16>, vector<1x16x8xf32> -> vector<1x16x8xf32>
    "tpu.trace_stop"() : () -> ()
    %4 = vector.shape_cast %3 : vector<1x16x8xf32> to vector<16x8xf32>
    %5 = arith.truncf %4 : vector<16x8xf32> to vector<16x8xbf16>
    %c0_4 = arith.constant 0 : index
    %c0_5 = arith.constant 0 : index
    %6 = vector.load %arg3[%c0_4, %c0_5] : memref<8x128xbf16, #tpu.memory_space<vmem>>, vector<8x128xbf16>
    %cst_6 = arith.constant dense<0.000000e+00> : vector<16x128xf32>
    %7 = tpu.matmul %5, %6, %cst_6 {dimension_numbers = #tpu.dot_dimension_numbers<[1], [0], [0], [1], [0, 0, 1, 1], [], []>} : vector<16x8xbf16>, vector<8x128xbf16>, vector<16x128xf32> -> vector<16x128xf32>
    %8 = vector.shape_cast %7 : vector<16x128xf32> to vector<1x16x128xf32>
    %c0_7 = arith.constant 0 : index
    %c0_8 = arith.constant 0 : index
    %9 = vector.load %arg4[%c0_7, %c0_8] : memref<16x128xf32, #tpu.memory_space<vmem>>, vector<16x128xf32>
    %10 = vector.shape_cast %9 : vector<16x128xf32> to vector<1x16x128xf32>
    %11 = arith.addf %8, %10 : vector<1x16x128xf32>
    %cst_9 = arith.constant 0.000000e+00 : f32
    %12 = vector.broadcast %cst_9 : f32 to vector<1x16x128xf32>
    %13 = arith.maximumf %11, %12 : vector<1x16x128xf32>
    %14 = vector.shape_cast %13 : vector<1x16x128xf32> to vector<16x128xf32>
    %15 = arith.truncf %14 : vector<16x128xf32> to vector<16x128xbf16>
    %c0_10 = arith.constant 0 : index
    %c0_11 = arith.constant 0 : index
    %16 = vector.load %arg5[%c0_10, %c0_11] : memref<128x128xbf16, #tpu.memory_space<vmem>>, vector<128x128xbf16>
    %cst_12 = arith.constant dense<0.000000e+00> : vector<16x128xf32>
    %17 = tpu.matmul %15, %16, %cst_12 {dimension_numbers = #tpu.dot_dimension_numbers<[1], [0], [0], [1], [0, 0, 1, 1], [], []>} : vector<16x128xbf16>, vector<128x128xbf16>, vector<16x128xf32> -> vector<16x128xf32>
    %c0_13 = arith.constant 0 : index
    %c0_14 = arith.constant 0 : index
    %18 = vector.load %arg6[%c0_13, %c0_14] : memref<1x128xf32, #tpu.memory_space<vmem>>, vector<1x128xf32>
    %19 = vector.broadcast %18 : vector<1x128xf32> to vector<16x128xf32>
    %20 = arith.addf %17, %19 : vector<16x128xf32>
    %21 = vector.shape_cast %20 : vector<16x128xf32> to vector<1x16x128xf32>
    %22 = arith.truncf %21 : vector<1x16x128xf32> to vector<1x16x128xbf16>
    "tpu.trace_start"() <{level = 10 : i32, message = "bij,bjk->bik"}> : () -> ()
    %cst_15 = arith.constant dense<0.000000e+00> : vector<1x16x128xf32>
    %23 = tpu.matmul %1, %22, %cst_15 {dimension_numbers = #tpu.dot_dimension_numbers<[2], [1], [1], [2], [0, 0, 0, 1, 1, 2], [0], [0]>} : vector<1x16x16xbf16>, vector<1x16x128xbf16>, vector<1x16x128xf32> -> vector<1x16x128xf32>
    "tpu.trace_stop"() : () -> ()
    %cst_16 = arith.constant 0.000000e+00 : f32
    %24 = vector.broadcast %cst_16 : f32 to vector<1x16x128xf32>
    %25 = arith.maximumf %23, %24 : vector<1x16x128xf32>
    %c0_17 = arith.constant 0 : index
    %c0_18 = arith.constant 0 : index
    %c0_19 = arith.constant 0 : index
    %26 = vector.load %arg7[%c0_17, %c0_18, %c0_19] : memref<1x16x128xf32, #tpu.memory_space<vmem>>, vector<1x16x128xf32>
    tpu.vector_store %arg7[%c0_17, %c0_18, %c0_19], %25 {strides = array<i32>} : memref<1x16x128xf32, #tpu.memory_space<vmem>>, vector<1x16x128xf32>,
    return
  }
  func.func @transform_0(%arg0: i32) -> (i32, i32) {
    %c0_i32 = arith.constant 0 : i32
    %c0_i32_0 = arith.constant 0 : i32
    %c0_i32_1 = arith.constant 0 : i32
    return %c0_i32, %c0_i32_0 : i32, i32
  }
  func.func @transform_1(%arg0: i32) -> (i32, i32, i32) {
    %c0_i32 = arith.constant 0 : i32
    %c0_i32_0 = arith.constant 0 : i32
    %c0_i32_1 = arith.constant 0 : i32
    return %arg0, %c0_i32, %c0_i32_0 : i32, i32, i32
  }
  func.func @transform_2(%arg0: i32) -> (i32, i32) {
    %c0_i32 = arith.constant 0 : i32
    %c0_i32_0 = arith.constant 0 : i32
    %c0_i32_1 = arith.constant 0 : i32
    return %c0_i32, %c0_i32_0 : i32, i32
  }
  func.func @transform_3(%arg0: i32) -> (i32, i32) {
    %c0_i32 = arith.constant 0 : i32
    %c0_i32_0 = arith.constant 0 : i32
    %c0_i32_1 = arith.constant 0 : i32
    return %c0_i32, %c0_i32_0 : i32, i32
  }
  func.func @transform_4(%arg0: i32) -> (i32, i32) {
    %c0_i32 = arith.constant 0 : i32
    %c0_i32_0 = arith.constant 0 : i32
    %c0_i32_1 = arith.constant 0 : i32
    return %c0_i32, %c0_i32_0 : i32, i32
  }
  func.func @transform_5(%arg0: i32) -> (i32, i32) {
    %c0_i32 = arith.constant 0 : i32
    %c0_i32_0 = arith.constant 0 : i32
    %c0_i32_1 = arith.constant 0 : i32
    return %c0_i32, %c0_i32_0 : i32, i32
  }
  func.func @transform_6(%arg0: i32) -> (i32, i32, i32) {
    %c0_i32 = arith.constant 0 : i32
    %c0_i32_0 = arith.constant 0 : i32
    %c0_i32_1 = arith.constant 0 : i32
    return %arg0, %c0_i32, %c0_i32_0 : i32, i32, i32
  }
}

</mosaic_0001>

<llo_original>
// kernel: tpu_custom_call.1
$region0: #{tpu_custom_call.1}
  #allocation0 [shape = 'u32[]', space=smem, size = 0x4, offset = 0x4, fixed_abs, tag = 'smem constant byte address 0x4 - core index']
  #allocation1 [shape = 'u32[144,128]{1,0:T(1,128)}', space=vmem, size = 0x12000, scoped, tag = 'internal scratch']
  %s0 = inlined_call_operand.vmem [shape: bf16[16,16], index: 0, kind: input, shape index: {}]
  %s1 = inlined_call_operand.vmem [shape: bf16[2,16,8], index: 1, kind: input, shape index: {}]
  %s2 = inlined_call_operand.vmem [shape: bf16[8,128], index: 2, kind: input, shape index: {}]
  %s3 = inlined_call_operand.vmem [shape: f32[16,128], index: 3, kind: input, shape index: {}]
  %s4 = inlined_call_operand.hbm [shape: bf16[128,128], index: 4, kind: input, shape index: {}]
  %s5 = inlined_call_operand.vmem [shape: f32[1,128], index: 5, kind: input, shape index: {}]
  %s6 = inlined_call_operand.hbm [shape: f32[2,16,128], index: 6, kind: output, shape index: {}]
  %s7 = sld [smem:[#allocation0]]
  $region61: #{tpu_custom_call.1} parent=0
    _
  %s9 = ssub.s32 1, %s7
  %s10 = scalar_select 0, %s9, %s7
  $region1: #{tpu_custom_call.1} parent=0
    #allocation2 [shape = 'u8[32768]{0}', space=vmem, size = 0x8000, scoped, tag = 'input window, operand 4, single buffered']
    #allocation3 [shape = 's32[2]{0}', space=sflag, size = 0x8, scoped, tag = 'scoped memory for tpu_custom_call.1']
    #allocation4 [shape = 's32[2]{0}', space=sflag, size = 0x8, scoped, tag = 'scoped memory for tpu_custom_call.1']
    #allocation5 [shape = 'u8[16384]{0}', space=vmem, size = 0x4000, scoped, tag = 'output window, operand 0']
    %11 = vsyncpa [#allocation3], 0
    %12 = vsyncpa [#allocation4], 0
    %s13 = scalar_lea.sflag [#allocation4], 1
    %14 = vsyncpa %s13, 0
    loop: start=0, step=1, limit=4
    $region2: #{tpu_custom_call.1} parent=1 // loop_pre_header
      _
    $region3: #{tpu_custom_call.1} parent=1 // loop_header
      %s16 = sphi 0, %s20
      %p17 = scmp.ge.s32.totalorder %s16, 4
      %s24 = sphi 0, %s24
      %s26 = sphi 0, %s24
      %s27 = sphi 0, %s26
      %s41 = sphi 0, %s27
      %s47 = sphi 0, %s49
      %s50 = sphi 0, %s47
      %s51 = sphi 0, %s50
      %s67 = sphi 0, %s51
      %s71 = sphi 0, %s71
      %s73 = sphi 0, %s71
      %s74 = sphi 0, %s73
      %s88 = sphi 0, %s74
      %s92 = sphi 0, %s92
      %s94 = sphi 0, %s92
      %s95 = sphi 0, %s94
      %s109 = sphi 0, %s95
      %s113 = sphi 0, %s113
      %s115 = sphi 0, %s113
      %s116 = sphi 0, %s115
      %s130 = sphi 0, %s116
      %s134 = sphi 0, %s134
      %s136 = sphi 0, %s134
      %s137 = sphi 0, %s136
      %s151 = sphi 0, %s137
      %s157 = sphi 0, %s159
      %s160 = sphi 0, %s157
      %s161 = sphi 0, %s160
      %s177 = sphi 0, %s161
    $region4: #{tpu_custom_call.1} parent=1 // loop_header_branch
      %19 = sbr.rel (%p17) target = $region8
    $region5: #{tpu_custom_call.1} parent=1 // loop_body
      %s21 = ssub.s32 %s16, 1
      %s22 = ssub.s32 %s16, 2
      %s23 = sadd.s32 %s16, 1
      %s25 = sadd.s32 %s24, 1
      %p28 = scmp.eq.s32.totalorder %s16, 1
      %p29 = scmp.ne.s32.totalorder %s24, %s26
      %p30 = scmp.eq.s32.totalorder %s16, 0
      %p31 = por %p29, %p30
      %p32 = scmp.ne.s32.totalorder %s24, %s26
      %p33 = scmp.eq.s32.totalorder %s21, 1
      %p34 = por %p32, %p33
      %p35 = scmp.ne.s32.totalorder %s26, %s27
      %p36 = scmp.eq.s32.totalorder %s21, 0
      %p37 = por %p35, %p36
      %p38 = scmp.ne.s32.totalorder %s26, %s27
      %p39 = scmp.eq.s32.totalorder %s22, 1
      %p40 = por %p38, %p39
      %p42 = scmp.ne.s32.totalorder %s27, %s41
      %p43 = scmp.eq.s32.totalorder %s22, 0
      %p44 = por %p42, %p43
      %s45 = ssub.s32 %s16, %s23
      %p46 = scmp.eq.s32.totalorder %s45, 0
      %s48 = sadd.s32 %s47, 1
      %s49 = scalar_select %p46, %s47, %s48
      %p52 = pneg %p46
      %p53 = scmp.eq.s32.totalorder %s16, 1
      %p54 = por %p52, %p53
      %p55 = scmp.ne.s32.totalorder %s47, %s50
      %p56 = scmp.eq.s32.totalorder %s16, 0
      %p57 = por %p55, %p56
      %p58 = scmp.ne.s32.totalorder %s47, %s50
      %p59 = scmp.eq.s32.totalorder %s21, 1
      %p60 = por %p58, %p59
      %p61 = scmp.ne.s32.totalorder %s50, %s51
      %p62 = scmp.eq.s32.totalorder %s21, 0
      %p63 = por %p61, %p62
      %p64 = scmp.ne.s32.totalorder %s50, %s51
      %p65 = scmp.eq.s32.totalorder %s22, 1
      %p66 = por %p64, %p65
      %p68 = scmp.ne.s32.totalorder %s51, %s67
      %p69 = scmp.eq.s32.totalorder %s22, 0
      %p70 = por %p68, %p69
      %s72 = sadd.s32 %s71, 1
      %p75 = scmp.eq.s32.totalorder %s16, 1
      %p76 = scmp.ne.s32.totalorder %s71, %s73
      %p77 = scmp.eq.s32.totalorder %s16, 0
      %p78 = por %p76, %p77
      %p79 = scmp.ne.s32.totalorder %s71, %s73
      %p80 = scmp.eq.s32.totalorder %s21, 1
      %p81 = por %p79, %p80
      %p82 = scmp.ne.s32.totalorder %s73, %s74
      %p83 = scmp.eq.s32.totalorder %s21, 0
      %p84 = por %p82, %p83
      %p85 = scmp.ne.s32.totalorder %s73, %s74
      %p86 = scmp.eq.s32.totalorder %s22, 1
      %p87 = por %p85, %p86
      %p89 = scmp.ne.s32.totalorder %s74, %s88
      %p90 = scmp.eq.s32.totalorder %s22, 0
      %p91 = por %p89, %p90
      %s93 = sadd.s32 %s92, 1
      %p96 = scmp.eq.s32.totalorder %s16, 1
      %p97 = scmp.ne.s32.totalorder %s92, %s94
      %p98 = scmp.eq.s32.totalorder %s16, 0
      %p99 = por %p97, %p98
      %p100 = scmp.ne.s32.totalorder %s92, %s94
      %p101 = scmp.eq.s32.totalorder %s21, 1
      %p102 = por %p100, %p101
      %p103 = scmp.ne.s32.totalorder %s94, %s95
      %p104 = scmp.eq.s32.totalorder %s21, 0
      %p105 = por %p103, %p104
      %p106 = scmp.ne.s32.totalorder %s94, %s95
      %p107 = scmp.eq.s32.totalorder %s22, 1
      %p108 = por %p106, %p107
      %p110 = scmp.ne.s32.totalorder %s95, %s109
      %p111 = scmp.eq.s32.totalorder %s22, 0
      %p112 = por %p110, %p111
      %s114 = sadd.s32 %s113, 1
      %p117 = scmp.eq.s32.totalorder %s16, 1
      %p118 = scmp.ne.s32.totalorder %s113, %s115
      %p119 = scmp.eq.s32.totalorder %s16, 0
      %p120 = por %p118, %p119
      %p121 = scmp.ne.s32.totalorder %s113, %s115
      %p122 = scmp.eq.s32.totalorder %s21, 1
      %p123 = por %p121, %p122
      %p124 = scmp.ne.s32.totalorder %s115, %s116
      %p125 = scmp.eq.s32.totalorder %s21, 0
      %p126 = por %p124, %p125
      %p127 = scmp.ne.s32.totalorder %s115, %s116
      %p128 = scmp.eq.s32.totalorder %s22, 1
      %p129 = por %p127, %p128
      %p131 = scmp.ne.s32.totalorder %s116, %s130
      %p132 = scmp.eq.s32.totalorder %s22, 0
      %p133 = por %p131, %p132
      %s135 = sadd.s32 %s134, 1
      %p138 = scmp.eq.s32.totalorder %s16, 1
      %p139 = scmp.ne.s32.totalorder %s134, %s136
      %p140 = scmp.eq.s32.totalorder %s16, 0
      %p141 = por %p139, %p140
      %p142 = scmp.ne.s32.totalorder %s134, %s136
      %p143 = scmp.eq.s32.totalorder %s21, 1
      %p144 = por %p142, %p143
      %p145 = scmp.ne.s32.totalorder %s136, %s137
      %p146 = scmp.eq.s32.totalorder %s21, 0
      %p147 = por %p145, %p146
      %p148 = scmp.ne.s32.totalorder %s136, %s137
      %p149 = scmp.eq.s32.totalorder %s22, 1
      %p150 = por %p148, %p149
      %p152 = scmp.ne.s32.totalorder %s137, %s151
      %p153 = scmp.eq.s32.totalorder %s22, 0
      %p154 = por %p152, %p153
      %s155 = ssub.s32 %s16, %s23
      %p156 = scmp.eq.s32.totalorder %s155, 0
      %s158 = sadd.s32 %s157, 1
      %s159 = scalar_select %p156, %s157, %s158
      %p162 = pneg %p156
      %p163 = scmp.eq.s32.totalorder %s16, 1
      %p164 = por %p162, %p163
      %p165 = scmp.ne.s32.totalorder %s157, %s160
      %p166 = scmp.eq.s32.totalorder %s16, 0
      %p167 = por %p165, %p166
      %p168 = scmp.ne.s32.totalorder %s157, %s160
      %p169 = scmp.eq.s32.totalorder %s21, 1
      %p170 = por %p168, %p169
      %p171 = scmp.ne.s32.totalorder %s160, %s161
      %p172 = scmp.eq.s32.totalorder %s21, 0
      %p173 = por %p171, %p172
      %p174 = scmp.ne.s32.totalorder %s160, %s161
      %p175 = scmp.eq.s32.totalorder %s22, 1
      %p176 = por %p174, %p175
      %p178 = scmp.ne.s32.totalorder %s161, %s177
      %p179 = scmp.eq.s32.totalorder %s22, 0
      %p180 = por %p178, %p179
      %p181 = scmp.le.s32.totalorder 1, %s16
      %p182 = scmp.lt.s32.totalorder %s16, 3
      %p183 = pnand %p181, %p182
      %p184 = pneg %p183
      // Predicated region
      $region9: #{tpu_custom_call.1} parent=5 // pred_check
        _
      $region10: #{tpu_custom_call.1} parent=5 // pred_check_branch
        %186 = sbr.rel (%p183) target = $region12
      $region11: #{tpu_custom_call.1} parent=5 // pred_region
        %s187 = ssub.s32 %s16, 1
        // Predicated region
        $region13: #{tpu_custom_call.1} parent=11 // pred_check
          %p188 = pneg %p37
        $region14: #{tpu_custom_call.1} parent=11 // pred_check_branch
          %190 = sbr.rel (%p188) target = $region16
        $region15: #{tpu_custom_call.1} parent=11 // pred_region
          _
        $region16: #{tpu_custom_call.1} parent=11 // pred_fallthru
          _
        // Predicated region
        $region17: #{tpu_custom_call.1} parent=11 // pred_check
          %p191 = pneg %p84
        $region18: #{tpu_custom_call.1} parent=11 // pred_check_branch
          %193 = sbr.rel (%p191) target = $region20
        $region19: #{tpu_custom_call.1} parent=11 // pred_region
          _
        $region20: #{tpu_custom_call.1} parent=11 // pred_fallthru
          _
        // Predicated region
        $region21: #{tpu_custom_call.1} parent=11 // pred_check
          %p194 = pneg %p105
        $region22: #{tpu_custom_call.1} parent=11 // pred_check_branch
          %196 = sbr.rel (%p194) target = $region24
        $region23: #{tpu_custom_call.1} parent=11 // pred_region
          _
        $region24: #{tpu_custom_call.1} parent=11 // pred_fallthru
          _
        // Predicated region
        $region25: #{tpu_custom_call.1} parent=11 // pred_check
          %p197 = pneg %p126
        $region26: #{tpu_custom_call.1} parent=11 // pred_check_branch
          %199 = sbr.rel (%p197) target = $region28
        $region27: #{tpu_custom_call.1} parent=11 // pred_region
          %s201 = ssub.s32 1024, 1024
          %202 = vsyncadd [#allocation3], %s201
          %s203 = sshll.u32 [#allocation2], 4
          %s204 = int_to_ptr.vmem [resolvable:$true] %s203
          %209 = dma.hbm_to_vmem [thread:$0]  %s4, 1024, %s204, [#allocation3], 64, 64, 4
        $region28: #{tpu_custom_call.1} parent=11 // pred_fallthru
          _
        // Predicated region
        $region29: #{tpu_custom_call.1} parent=11 // pred_check
          %p210 = pneg %p147
        $region30: #{tpu_custom_call.1} parent=11 // pred_check_branch
          %212 = sbr.rel (%p210) target = $region32
        $region31: #{tpu_custom_call.1} parent=11 // pred_region
          _
        $region32: #{tpu_custom_call.1} parent=11 // pred_fallthru
          _
      $region12: #{tpu_custom_call.1} parent=5 // pred_fallthru
        _
      %p213 = scmp.lt.s32.totalorder %s16, 2
      // Predicated region
      $region33: #{tpu_custom_call.1} parent=5 // pred_check
        %p214 = pneg %p213
      $region34: #{tpu_custom_call.1} parent=5 // pred_check_branch
        %216 = sbr.rel (%p214) target = $region36
      $region35: #{tpu_custom_call.1} parent=5 // pred_region
        // Predicated region
        $region37: #{tpu_custom_call.1} parent=35 // pred_check
          %p217 = pneg %p57
        $region38: #{tpu_custom_call.1} parent=35 // pred_check_branch
          %219 = sbr.rel (%p217) target = $region40
        $region39: #{tpu_custom_call.1} parent=35 // pred_region
          %p220 = scmp.lt.s32.totalorder %s16, 1
          %s221 = scalar_select %p220, %s16, 1
          %s222 = smul.addr %s221, 2
          %s223 = smul.addr %s222, 4
          %s224 = scalar_lea.vmem %s1, %s223
        $region40: #{tpu_custom_call.1} parent=35 // pred_fallthru
          _
      $region36: #{tpu_custom_call.1} parent=5 // pred_fallthru
        _
      %p225 = scmp.le.s32.totalorder 1, %s16
      %p226 = scmp.lt.s32.totalorder %s16, 3
      %p227 = pnand %p225, %p226
      %p228 = pneg %p227
      // Predicated region
      $region41: #{tpu_custom_call.1} parent=5 // pred_check
        _
      $region42: #{tpu_custom_call.1} parent=5 // pred_check_branch
        %230 = sbr.rel (%p227) target = $region44
      $region43: #{tpu_custom_call.1} parent=5 // pred_region
        %s231 = ssub.s32 %s16, 1
        // Predicated region
        $region45: #{tpu_custom_call.1} parent=43 // pred_check
          %p232 = pneg %p126
        $region46: #{tpu_custom_call.1} parent=43 // pred_check_branch
          %234 = sbr.rel (%p232) target = $region48
        $region47: #{tpu_custom_call.1} parent=43 // pred_region
          %235 = dma.done [#allocation3], 1024
        $region48: #{tpu_custom_call.1} parent=43 // pred_fallthru
          _
        %p236 = pneg %p37
        %p237 = pneg %p34
        %p238 = scmp.lt.s32.totalorder %s21, 1
        %s239 = scalar_select %p238, %s21, 1
        %s240 = smul.addr %s239, 2
        %s241 = smul.addr %s240, 4
        %s242 = scalar_lea.vmem %s1, %s241
        %p243 = pneg %p63
        %p244 = pneg %p60
        %p245 = pneg %p84
        %p246 = pneg %p81
        %p247 = pneg %p105
        %p248 = pneg %p102
        %p249 = pneg %p126
        %p250 = pneg %p123
        %p251 = pneg %p147
        %p252 = pneg %p144
        %p253 = pneg %p173
        %p254 = pneg %p170
        %s255 = sand.u32 %s160, 1
        %s256 = scalar_lea.sflag [#allocation4], %s255
        %s257 = sand.u32 %s160, 1
        %s258 = smul.addr %s257, 16
        %s259 = scalar_lea.vmem [#allocation5], %s258
        %p260 = scmp.lt.s32.totalorder %s21, 1
        %s261 = scalar_select %p260, %s21, 1
        %s262 = smul.addr %s261, 2
        %s263 = smul.addr %s262, 4
        %s264 = scalar_lea.vmem %s1, %s263
        %v266 = vld [vmem:[%s0] sm:$0xf]
        %v267 = vld [vmem:[%s0 + $0x4] sm:$0xf]
        %v268 = vld [vmem:[%s264] sm:$0xf]
        %v269 = vld [vmem:[%s264 + $0x4] sm:$0xf]
        %v272 = vunpack.c.l.b16 %v266
        %v273 = vunpack.c.l.b16 %v267
        %v274 = vpack.c.b16 %v273, %v272
        %v277 = vunpack.c.l.b16 %v268
        %v278 = vunpack.c.l.b16 %v269
        %v279 = vpack.c.b16 %v278, %v277
        %vm281 = vcmask 130048
        %v283 = vsel %vm281, %v274, 0
        %285 = vmatprep.subr.bf16.mxu0 0
        %286 = vmatpush1.bf16.msra.mxu0 %v279
        %287 = vmatprep.subr.bf16.mxu0 0
        %288 = vmatpush1.bf16.msra.mxu0 0
        %289 = vmatprep.subr.bf16.mxu0 0
        %290 = vmatpush1.bf16.msra.mxu0 0
        %291 = vmatprep.subr.bf16.mxu0 0
        %292 = vmatpush1.bf16.msra.mxu0 0
        %293 = vmatprep.subr.bf16.mxu0 0
        %294 = vmatpush1.bf16.msra.mxu0 0
        %295 = vmatprep.subr.bf16.mxu0 0
        %296 = vmatpush1.bf16.msra.mxu0 0
        %297 = vmatprep.subr.bf16.mxu0 0
        %298 = vmatpush1.bf16.msra.mxu0 0
        %299 = vmatprep.subr.bf16.mxu0 0
        %300 = vmatpush1.bf16.msra.mxu0 0
        %301 = vmatprep.subr.bf16.mxu0 0
        %302 = vmatpush1.bf16.msra.mxu0 0
        %303 = vmatprep.subr.bf16.mxu0 0
        %304 = vmatpush1.bf16.msra.mxu0 0
        %305 = vmatprep.subr.bf16.mxu0 0
        %306 = vmatpush1.bf16.msra.mxu0 0
        %307 = vmatprep.subr.bf16.mxu0 0
        %308 = vmatpush1.bf16.msra.mxu0 0
        %309 = vmatprep.subr.bf16.mxu0 0
        %310 = vmatpush1.bf16.msra.mxu0 0
        %311 = vmatprep.subr.bf16.mxu0 0
        %312 = vmatpush1.bf16.msra.mxu0 0
        %313 = vmatprep.subr.bf16.mxu0 0
        %314 = vmatpush1.bf16.msra.mxu0 0
        %315 = vmatprep.subr.bf16.mxu0 0
        %316 = vmatpush1.bf16.msra.mxu0 0
        %317 = vmatprep.mubr.bf16.mxu0 0
        %318 = vmatmul.mubr.bf16.gmra.mrb[0].mxu0 %v283
        %v319 = vpop.f32.mrb[0].mxu0
        %v320 = vadd.f32 0.0, %v319
        %v321 = vpop.f32.mrb[0].mxu0
        %v322 = vpop.f32.mrb[0].mxu0
        %v323 = vadd.f32 0.0, %v322
        %v324 = vpop.f32.mrb[0].mxu0
        %325 = vdwg.mxu0
        %v326 = vpack.c.bf16 %v323, %v320
        %v327 = vld [vmem:[%s2] sm:$0xf]
        %vm328 = vcmask 64512
        %v330 = vsel %vm328, %v326, 0
        %vm332 = vcmask 1043456
        %v334 = vsel %vm332, %v327, 0
        %336 = vmatprep.subr.bf16.mxu0 0
        %337 = vmatpush1.bf16.msra.mxu0 %v334
        %338 = vmatprep.subr.bf16.mxu0 0
        %339 = vmatpush1.bf16.msra.mxu0 0
        %340 = vmatprep.subr.bf16.mxu0 0
        %341 = vmatpush1.bf16.msra.mxu0 0
        %342 = vmatprep.subr.bf16.mxu0 0
        %343 = vmatpush1.bf16.msra.mxu0 0
        %344 = vmatprep.subr.bf16.mxu0 0
        %345 = vmatpush1.bf16.msra.mxu0 0
        %346 = vmatprep.subr.bf16.mxu0 0
        %347 = vmatpush1.bf16.msra.mxu0 0
        %348 = vmatprep.subr.bf16.mxu0 0
        %349 = vmatpush1.bf16.msra.mxu0 0
        %350 = vmatprep.subr.bf16.mxu0 0
        %351 = vmatpush1.bf16.msra.mxu0 0
        %352 = vmatprep.subr.bf16.mxu0 0
        %353 = vmatpush1.bf16.msra.mxu0 0
        %354 = vmatprep.subr.bf16.mxu0 0
        %355 = vmatpush1.bf16.msra.mxu0 0
        %356 = vmatprep.subr.bf16.mxu0 0
        %357 = vmatpush1.bf16.msra.mxu0 0
        %358 = vmatprep.subr.bf16.mxu0 0
        %359 = vmatpush1.bf16.msra.mxu0 0
        %360 = vmatprep.subr.bf16.mxu0 0
        %361 = vmatpush1.bf16.msra.mxu0 0
        %362 = vmatprep.subr.bf16.mxu0 0
        %363 = vmatpush1.bf16.msra.mxu0 0
        %364 = vmatprep.subr.bf16.mxu0 0
        %365 = vmatpush1.bf16.msra.mxu0 0
        %366 = vmatprep.subr.bf16.mxu0 0
        %367 = vmatpush1.bf16.msra.mxu0 0
        %368 = vmatprep.mubr.bf16.mxu0 0
        %369 = vmatmul.mubr.bf16.gmra.mrb[0].mxu0 %v330
        %v370 = vpop.f32.mrb[0].mxu0
        %v371 = vadd.f32 0.0, %v370
        %v372 = vpop.f32.mrb[0].mxu0
        %v373 = vpop.f32.mrb[0].mxu0
        %v374 = vadd.f32 0.0, %v373
        %v375 = vpop.f32.mrb[0].mxu0
        %376 = vdwg.mxu0
        %v377 = vld [vmem:[%s3] sm:$0xff]
        %v378 = vld [vmem:[%s3 + $0x8] sm:$0xff]
        %v379 = vadd.f32 %v371, %v377
        %v380 = vadd.f32 %v374, %v378
        %v381 = vmax.f32 %v379, 0.0
        %v382 = vmax.f32 %v380, 0.0
        %v383 = vpack.c.bf16 %v382, %v381
        %v384 = vld [vmem:[#allocation2] sm:$0xf]
        %v385 = vld [vmem:[#allocation2 + $0x4] sm:$0xf]
        %v386 = vld [vmem:[#allocation2 + $0x8] sm:$0xf]
        %v387 = vld [vmem:[#allocation2 + $0xc] sm:$0xf]
        %v388 = vld [vmem:[#allocation2 + $0x10] sm:$0xf]
        %v389 = vld [vmem:[#allocation2 + $0x14] sm:$0xf]
        %v390 = vld [vmem:[#allocation2 + $0x18] sm:$0xf]
        %v391 = vld [vmem:[#allocation2 + $0x1c] sm:$0xf]
        %v392 = vld [vmem:[#allocation2 + $0x20] sm:$0xf]
        %v393 = vld [vmem:[#allocation2 + $0x24] sm:$0xf]
        %v394 = vld [vmem:[#allocation2 + $0x28] sm:$0xf]
        %v395 = vld [vmem:[#allocation2 + $0x2c] sm:$0xf]
        %v396 = vld [vmem:[#allocation2 + $0x30] sm:$0xf]
        %v397 = vld [vmem:[#allocation2 + $0x34] sm:$0xf]
        %v398 = vld [vmem:[#allocation2 + $0x38] sm:$0xf]
        %v399 = vld [vmem:[#allocation2 + $0x3c] sm:$0xf]
        %v400 = vld [vmem:[%s5] sm:$0x1]
        %v402 = vlaneseq
        %v403 = vshrl.u32 %v402, 7
        %v404 = vsub.s32 0, %v403
        %v405 = vrot.slane %v400, %v404
        %v423 = vunpack.c.l.b16 %v384
        %v424 = vunpack.c.l.b16 %v385
        %v425 = vunpack.c.l.b16 %v386
        %v426 = vunpack.c.l.b16 %v387
        %v427 = vunpack.c.l.b16 %v388
        %v428 = vunpack.c.l.b16 %v389
        %v429 = vunpack.c.l.b16 %v390
        %v430 = vunpack.c.l.b16 %v391
        %v431 = vunpack.c.l.b16 %v392
        %v432 = vunpack.c.l.b16 %v393
        %v433 = vunpack.c.l.b16 %v394
        %v434 = vunpack.c.l.b16 %v395
        %v435 = vunpack.c.l.b16 %v396
        %v436 = vunpack.c.l.b16 %v397
        %v437 = vunpack.c.l.b16 %v398
        %v438 = vunpack.c.l.b16 %v399
        %v439 = vpack.c.b16 %v424, %v423
        %v440 = vpack.c.b16 %v426, %v425
        %v441 = vpack.c.b16 %v428, %v427
        %v442 = vpack.c.b16 %v430, %v429
        %v443 = vpack.c.b16 %v432, %v431
        %v444 = vpack.c.b16 %v434, %v433
        %v445 = vpack.c.b16 %v436, %v435
        %v446 = vpack.c.b16 %v438, %v437
        %455 = vmatprep.subr.bf16.mxu0 0
        %456 = vmatpush1.bf16.msra.mxu0 %v439
        %457 = vmatprep.subr.bf16.mxu0 0
        %458 = vmatpush1.bf16.msra.mxu0 %v440
        %459 = vmatprep.subr.bf16.mxu0 0
        %460 = vmatpush1.bf16.msra.mxu0 %v441
        %461 = vmatprep.subr.bf16.mxu0 0
        %462 = vmatpush1.bf16.msra.mxu0 %v442
        %463 = vmatprep.subr.bf16.mxu0 0
        %464 = vmatpush1.bf16.msra.mxu0 %v443
        %465 = vmatprep.subr.bf16.mxu0 0
        %466 = vmatpush1.bf16.msra.mxu0 %v444
        %467 = vmatprep.subr.bf16.mxu0 0
        %468 = vmatpush1.bf16.msra.mxu0 %v445
        %469 = vmatprep.subr.bf16.mxu0 0
        %470 = vmatpush1.bf16.msra.mxu0 %v446
        %471 = vmatprep.subr.bf16.mxu0 0
        %472 = vmatpush1.bf16.msra.mxu0 0
        %473 = vmatprep.subr.bf16.mxu0 0
        %474 = vmatpush1.bf16.msra.mxu0 0
        %475 = vmatprep.subr.bf16.mxu0 0
        %476 = vmatpush1.bf16.msra.mxu0 0
        %477 = vmatprep.subr.bf16.mxu0 0
        %478 = vmatpush1.bf16.msra.mxu0 0
        %479 = vmatprep.subr.bf16.mxu0 0
        %480 = vmatpush1.bf16.msra.mxu0 0
        %481 = vmatprep.subr.bf16.mxu0 0
        %482 = vmatpush1.bf16.msra.mxu0 0
        %483 = vmatprep.subr.bf16.mxu0 0
        %484 = vmatpush1.bf16.msra.mxu0 0
        %485 = vmatprep.subr.bf16.mxu0 0
        %486 = vmatpush1.bf16.msra.mxu0 0
        %487 = vmatprep.mubr.bf16.mxu0 0
        %488 = vmatmul.mubr.bf16.gmra.mrb[0].mxu0 %v383
        %v489 = vpop.f32.mrb[0].mxu0
        %v490 = vadd.f32 %v405, %v489
        %v491 = vpop.f32.mrb[0].mxu0
        %v492 = vpop.f32.mrb[0].mxu0
        %v493 = vadd.f32 %v405, %v492
        %v494 = vpop.f32.mrb[0].mxu0
        %495 = vdwg.mxu0
        %v496 = vpack.c.bf16 %v493, %v490
        %497 = vmatprep.subr.bf16.mxu0 0
        %498 = vmatpush1.bf16.msra.mxu0 %v496
        %499 = vmatprep.subr.bf16.mxu0 0
        %500 = vmatpush1.bf16.msra.mxu0 0
        %501 = vmatprep.subr.bf16.mxu0 0
        %502 = vmatpush1.bf16.msra.mxu0 0
        %503 = vmatprep.subr.bf16.mxu0 0
        %504 = vmatpush1.bf16.msra.mxu0 0
        %505 = vmatprep.subr.bf16.mxu0 0
        %506 = vmatpush1.bf16.msra.mxu0 0
        %507 = vmatprep.subr.bf16.mxu0 0
        %508 = vmatpush1.bf16.msra.mxu0 0
        %509 = vmatprep.subr.bf16.mxu0 0
        %510 = vmatpush1.bf16.msra.mxu0 0
        %511 = vmatprep.subr.bf16.mxu0 0
        %512 = vmatpush1.bf16.msra.mxu0 0
        %513 = vmatprep.subr.bf16.mxu0 0
        %514 = vmatpush1.bf16.msra.mxu0 0
        %515 = vmatprep.subr.bf16.mxu0 0
        %516 = vmatpush1.bf16.msra.mxu0 0
        %517 = vmatprep.subr.bf16.mxu0 0
        %518 = vmatpush1.bf16.msra.mxu0 0
        %519 = vmatprep.subr.bf16.mxu0 0
        %520 = vmatpush1.bf16.msra.mxu0 0
        %521 = vmatprep.subr.bf16.mxu0 0
        %522 = vmatpush1.bf16.msra.mxu0 0
        %523 = vmatprep.subr.bf16.mxu0 0
        %524 = vmatpush1.bf16.msra.mxu0 0
        %525 = vmatprep.subr.bf16.mxu0 0
        %526 = vmatpush1.bf16.msra.mxu0 0
        %527 = vmatprep.subr.bf16.mxu0 0
        %528 = vmatpush1.bf16.msra.mxu0 0
        %529 = vmatprep.mubr.bf16.mxu0 0
        %530 = vmatmul.mubr.bf16.gmra.mrb[0].mxu0 %v283
        %v531 = vpop.f32.mrb[0].mxu0
        %v532 = vadd.f32 0.0, %v531
        %v533 = vpop.f32.mrb[0].mxu0
        %v534 = vpop.f32.mrb[0].mxu0
        %v535 = vadd.f32 0.0, %v534
        %v536 = vpop.f32.mrb[0].mxu0
        %537 = vdwg.mxu0
        %v538 = vmax.f32 %v532, 0.0
        %v539 = vmax.f32 %v535, 0.0
        %540 = vst [vmem:[%s259] sm:$0xff] %v538
        %541 = vst [vmem:[%s259 + $0x8] sm:$0xff] %v539
        %s542 = sand.u32 %s160, 1
        %s543 = scalar_lea.sflag [#allocation4], %s542
        %s544 = sand.u32 %s160, 1
        %s545 = smul.addr %s544, 16
        %s546 = scalar_lea.vmem [#allocation5], %s545
        // Predicated region
        $region49: #{tpu_custom_call.1} parent=43 // pred_check
          %p547 = pneg %p170
        $region50: #{tpu_custom_call.1} parent=43 // pred_check_branch
          %549 = sbr.rel (%p547) target = $region52
        $region51: #{tpu_custom_call.1} parent=43 // pred_region
          %s551 = ssub.s32 256, 256
          %552 = vsyncadd %s543, %s551
          %s553 = smul.addr %s21, 2
          %s554 = smul.addr %s553, 128
          %s555 = scalar_lea.hbm %s6, %s554
          %s556 = sshll.u32 %s546, 4
          %s557 = int_to_ptr.vmem [resolvable:$true] %s556
          %562 = dma.vmem_to_hbm [thread:$0]  %s557, 256, %s555, %s543, 128, 128, 8
        $region52: #{tpu_custom_call.1} parent=43 // pred_fallthru
          _
      $region44: #{tpu_custom_call.1} parent=5 // pred_fallthru
        _
      %p563 = scmp.le.s32.totalorder 2, %s16
      // Predicated region
      $region53: #{tpu_custom_call.1} parent=5 // pred_check
        %p564 = pneg %p563
      $region54: #{tpu_custom_call.1} parent=5 // pred_check_branch
        %566 = sbr.rel (%p564) target = $region56
      $region55: #{tpu_custom_call.1} parent=5 // pred_region
        %s567 = ssub.s32 %s16, 2
        // Predicated region
        $region57: #{tpu_custom_call.1} parent=55 // pred_check
          %p568 = pneg %p176
        $region58: #{tpu_custom_call.1} parent=55 // pred_check_branch
          %570 = sbr.rel (%p568) target = $region60
        $region59: #{tpu_custom_call.1} parent=55 // pred_region
          %s571 = sand.u32 %s161, 1
          %s572 = scalar_lea.sflag [#allocation4], %s571
          %s573 = sand.u32 %s161, 1
          %s574 = smul.addr %s573, 16
          %s575 = scalar_lea.vmem [#allocation5], %s574
          %576 = dma.done %s572, 256
        $region60: #{tpu_custom_call.1} parent=55 // pred_fallthru
          _
      $region56: #{tpu_custom_call.1} parent=5 // pred_fallthru
        _
    $region6: #{tpu_custom_call.1} parent=1 // loop_footer
      %s20 = sadd.s32 1, %s16
    $region7: #{tpu_custom_call.1} parent=1 // loop_footer_branch
      %15 = sbr.rel target = $region3
    $region8: #{tpu_custom_call.1} parent=1 // loop_exit
      _
    %577 = vsyncpa [#allocation3], 1
    %s578 = scalar_lea.sflag [#allocation3], 1
    %579 = vsyncpa %s578, 1
    %580 = vsyncpa [#allocation4], 1
    %s581 = scalar_lea.sflag [#allocation4], 1
    %582 = vsyncpa %s581, 1

</llo_original>
